<compile_context>
chip_gen: v6e
topology: v6e:2x2x1
jax: 0.10.0
libtpu: 0.0.40
codegen_flags: <defaults>
</compile_context>

<pallas_src>
import functools

import jax
import jax.numpy as jnp
from jax import lax
from jax.experimental import pallas as pl
from jax.experimental.pallas import tpu as pltpu

LANES = 128
ACC_ROWS = 64   # (64, 128) resident-output accumulator -> 8 independent add chains


def _round_up(a, b):
    return (a + b - 1) // b * b


def _max_block_rows(itemsize):
    """Generation/dtype-aware block height (rows of 128 lanes)."""
    rows = 4096                      # 2 MiB per f32 input buffer
    try:
        kind = jax.devices()[0].device_kind.lower()
    except Exception:
        kind = ""
    if "v5 lite" in kind or "v5e" in kind or "v5lite" in kind:
        rows = 2048                  # v5e: DMA/step already dominates step overhead
    if itemsize <= 2:
        rows *= 2                    # keep per-step DMA bytes constant for 16-bit
    return rows


def _dimension_semantics(n_splits):
    """CORE_PARALLEL on v7x so the split axis actually shards across both TCs."""
    if n_splits > 1:
        try:
            kind = jax.devices()[0].device_kind.lower()
        except Exception:
            kind = ""
        core_parallel = getattr(pltpu, "CORE_PARALLEL", None)
        arbitrary = getattr(pltpu, "ARBITRARY", None)
        if "v7" in kind and core_parallel is not None and arbitrary is not None:
            return (core_parallel, arbitrary)
    return ("parallel", "arbitrary")


def _check_loss_kernel(inp_ref, tgt_ref, out_ref, *, tau, block_rows,
                       blk_per_split, total_rows, ragged):
    """Grid = (n_splits, blocks_per_split); axis 1 is the reduction axis.

    The (ACC_ROWS, LANES) output block is resident across axis 1 and acts as the
    accumulator (one block per split)."""
    i = pl.program_id(1)

    @pl.when(i == 0)
    def _():
        out_ref[...] = jnp.zeros_like(out_ref)

    x = inp_ref[...].astype(jnp.float32)
    t = tgt_ref[...].astype(jnp.float32)
    err = t - x
    # where(err < 0, tau - 1, tau) * err  -- zero-padded elements (err == 0) give 0.
    loss = jnp.where(err < 0, tau - 1.0, tau) * err

    if ragged:
        # Last global block extends past `total_rows`; those VMEM rows hold stale
        # data, so select them away (select, not multiply -> NaN/Inf safe).
        blk = pl.program_id(0) * blk_per_split + i
        valid_rows = total_rows - blk * block_rows
        row_idx = lax.broadcasted_iota(jnp.int32, loss.shape, 0)
        loss = jnp.where(row_idx < valid_rows, loss, 0.0)

    # Fold the (block_rows, 128) block into the (64, 128) resident output block:
    # the reshape only splits the leading (batch-major) dim, so this is 8
    # independent chains of plain VPU vreg adds.
    main = (block_rows // ACC_ROWS) * ACC_ROWS
    if main:
        body = loss if main == block_rows else loss[:main]
        out_ref[...] += jnp.sum(body.reshape(-1, ACC_ROWS, LANES), axis=0)
    rem = block_rows - main
    if rem:
        # Only reachable on the tiny single-block path (block_rows < 64 or not a
        # multiple of 64); sub-tile RMW on the resident output block is fine.
        out_ref[pl.ds(0, rem), :] += loss[main:, :]


def check_loss_pallas(inp, target, tau, reduction="mean"):
    assert inp.shape == target.shape, (inp.shape, target.shape)
    n = inp.size
    if n == 0:
        return jnp.float32(0.0)

    x = jnp.ravel(inp)
    t = jnp.ravel(target)
    itemsize = jnp.dtype(inp.dtype).itemsize

    # Lane alignment: n % 128 == 0 (common case) -> free reshape, no copy.
    # Otherwise pad to the next multiple of 128 (<= 127 wasted elements; the
    # zero padding contributes exactly 0 to the check-loss sum).
    if n % LANES:
        m = _round_up(n, LANES)
        x = jnp.pad(x, (0, m - n))
        t = jnp.pad(t, (0, m - n))
    else:
        m = n
    rows = m // LANES

    x2 = x.reshape(rows, LANES)
    t2 = t.reshape(rows, LANES)

    max_rows = _max_block_rows(itemsize)
    if rows <= max_rows:
        block_rows = rows            # single block == full array (always legal)
        n_blocks = 1
    else:
        block_rows = max_rows
        n_blocks = (rows + block_rows - 1) // block_rows

    ragged = (rows % block_rows) != 0
    # Two splits feed both TensorCores on v7x (only when the block count divides
    # evenly); harmless back-to-back halves on single-TC v5e/v6e.
    n_splits = 2 if (n_blocks > 1 and n_blocks % 2 == 0) else 1
    blk_per_split = n_blocks // n_splits

    kernel = functools.partial(
        _check_loss_kernel, tau=float(tau), block_rows=block_rows,
        blk_per_split=blk_per_split, total_rows=rows, ragged=ragged)

    out_bytes = n_splits * ACC_ROWS * LANES * 4
    cost = pl.CostEstimate(
        flops=4 * rows * LANES,
        transcendentals=0,
        bytes_accessed=2 * rows * LANES * itemsize + out_bytes)

    partials = pl.pallas_call(
        kernel,
        out_shape=jax.ShapeDtypeStruct((n_splits * ACC_ROWS, LANES), jnp.float32),
        grid_spec=pltpu.PrefetchScalarGridSpec(
            num_scalar_prefetch=0,
            grid=(n_splits, blk_per_split),
            in_specs=[
                pl.BlockSpec((block_rows, LANES),
                             lambda c, i: (c * blk_per_split + i, 0)),
                pl.BlockSpec((block_rows, LANES),
                             lambda c, i: (c * blk_per_split + i, 0)),
            ],
            out_specs=pl.BlockSpec((ACC_ROWS, LANES), lambda c, i: (c, 0)),
        ),
        compiler_params=pltpu.CompilerParams(
            dimension_semantics=_dimension_semantics(n_splits),
            vmem_limit_bytes=32 * 1024 * 1024),
        cost_estimate=cost,
    )(x2, t2)

    total = jnp.sum(partials)          # tiny (n_splits*64*128) wrapper-side reduce
    if reduction == "mean":
        return total / jnp.float32(n)
    return total


class CheckLossPallas:
    """JAX/Pallas port of the PyTorch CheckLoss module."""

    def __init__(self, tau, reduction="mean"):
        self.tau = tau
        self.reduction = reduction

    def __call__(self, inp, target):
        return check_loss_pallas(inp, target, self.tau, self.reduction)


def _reference(inp, target, tau, reduction="mean"):
    err = target.astype(jnp.float32) - inp.astype(jnp.float32)
    loss = jnp.where(err < 0, tau - 1.0, tau) * err
    return jnp.mean(loss) if reduction == "mean" else jnp.sum(loss)


if __name__ == "__main__":
    key = jax.random.PRNGKey(0)
    k1, k2, k3, k4, k5, k6, k7, k8 = jax.random.split(key, 8)

    # Small NCHW-ish shapes (the loss is shape-agnostic).
    x = jax.random.normal(k1, (2, 4, 16, 16), dtype=jnp.float32)
    y = jax.random.normal(k2, (2, 4, 16, 16), dtype=jnp.float32)

    tau = 0.7
    loss_mod = CheckLossPallas(tau=tau, reduction="mean")

    out = jax.block_until_ready(loss_mod(x, y))
    ref = _reference(x, y, tau, "mean")
    assert jnp.allclose(out, ref, rtol=1e-5, atol=1e-5), (out, ref)

    # 'sum' reduction path.
    out_sum = jax.block_until_ready(check_loss_pallas(x, y, tau, "sum"))
    ref_sum = _reference(x, y, tau, "sum")
    assert jnp.allclose(out_sum, ref_sum, rtol=1e-5, atol=1e-4), (out_sum, ref_sum)

    # Unaligned size (n % 128 != 0) -> minimal-pad path.
    a = jax.random.normal(k3, (3, 5, 17, 19), dtype=jnp.float32)
    b = jax.random.normal(k4, (3, 5, 17, 19), dtype=jnp.float32)
    out_pad = jax.block_until_ready(check_loss_pallas(a, b, 0.25, "mean"))
    ref_pad = _reference(a, b, 0.25, "mean")
    assert jnp.allclose(out_pad, ref_pad, rtol=1e-5, atol=1e-5), (out_pad, ref_pad)

    # Multi-block path with a ragged (masked) last block, zero-copy reshape.
    c = jax.random.normal(k5, (2, 300, 1024), dtype=jnp.float32)
    d = jax.random.normal(k6, (2, 300, 1024), dtype=jnp.float32)
    out_big = jax.block_until_ready(check_loss_pallas(c, d, 0.9, "mean"))
    ref_big = _reference(c, d, 0.9, "mean")
    assert jnp.allclose(out_big, ref_big, rtol=1e-4, atol=1e-5), (out_big, ref_big)

    # bf16 inputs (in-register upcast path).
    e = jax.random.normal(k7, (4, 8, 128), dtype=jnp.bfloat16)
    f = jax.random.normal(k8, (4, 8, 128), dtype=jnp.bfloat16)
    out_bf = jax.block_until_ready(check_loss_pallas(e, f, 0.3, "mean"))
    ref_bf = _reference(e, f, 0.3, "mean")
    assert jnp.allclose(out_bf, ref_bf, rtol=1e-3, atol=1e-3), (out_bf, ref_bf)

    print("KERNEL_OK")
</pallas_src>

<mosaic_0001>
module attributes {stable_mosaic.version = 11 : i64} {
  func.func @_check_loss_kernel(%arg0: i32, %arg1: i32, %arg2: memref<16x128xf32, #tpu.memory_space<vmem>>, %arg3: memref<16x128xf32, #tpu.memory_space<vmem>>, %arg4: memref<64x128xf32, #tpu.memory_space<vmem>>) attributes {dimension_semantics = [#tpu.dimension_semantics<parallel>, #tpu.dimension_semantics<arbitrary>], iteration_bounds = array<i64: 1, 1>, scalar_prefetch = 0 : i64, scratch_operands = 0 : i64, tpu.core_type = #tpu.core_type<tc>, window_params = [{transform_indices = @transform_0, window_bounds = array<i64: 16, 128>}, {transform_indices = @transform_1, window_bounds = array<i64: 16, 128>}, {transform_indices = @transform_2, window_bounds = array<i64: 64, 128>}]} {
    %c0_i32 = arith.constant 0 : i32
    %0 = arith.cmpi eq, %arg1, %c0_i32 : i32
    %1 = arith.extui %0 : i1 to i32
    %c0_i32_0 = arith.constant 0 : i32
    %2 = arith.cmpi ne, %1, %c0_i32_0 : i32
    scf.if %2 {
      %cst_10 = arith.constant 0.000000e+00 : f32
      %15 = vector.broadcast %cst_10 : f32 to vector<64x128xf32>
      %c0_11 = arith.constant 0 : index
      %c0_12 = arith.constant 0 : index
      %16 = vector.load %arg4[%c0_11, %c0_12] : memref<64x128xf32, #tpu.memory_space<vmem>>, vector<64x128xf32>
      tpu.vector_store %arg4[%c0_11, %c0_12], %15 {strides = array<i32>} : memref<64x128xf32, #tpu.memory_space<vmem>>, vector<64x128xf32>,
    } else {
    }
    %c0 = arith.constant 0 : index
    %c0_1 = arith.constant 0 : index
    %3 = vector.load %arg2[%c0, %c0_1] : memref<16x128xf32, #tpu.memory_space<vmem>>, vector<16x128xf32>
    %c0_2 = arith.constant 0 : index
    %c0_3 = arith.constant 0 : index
    %4 = vector.load %arg3[%c0_2, %c0_3] : memref<16x128xf32, #tpu.memory_space<vmem>>, vector<16x128xf32>
    %5 = arith.subf %4, %3 : vector<16x128xf32>
    %cst = arith.constant 0.000000e+00 : f32
    %6 = vector.broadcast %cst : f32 to vector<16x128xf32>
    %7 = arith.cmpf olt, %5, %6 : vector<16x128xf32>
    %cst_4 = arith.constant -3.000000e-01 : f32
    %cst_5 = arith.constant 0.699999988 : f32
    %8 = vector.broadcast %cst_4 : f32 to vector<16x128xf32>
    %9 = vector.broadcast %cst_5 : f32 to vector<16x128xf32>
    %10 = arith.select %7, %8, %9 : vector<16x128xi1>, vector<16x128xf32>
    %11 = arith.mulf %10, %5 : vector<16x128xf32>
    %c0_6 = arith.constant 0 : index
    %c0_7 = arith.constant 0 : index
    %12 = vector.load %arg4[%c0_6, %c0_7] : memref<64x128xf32, #tpu.memory_space<vmem>>, vector<16x128xf32>
    %13 = arith.addf %12, %11 : vector<16x128xf32>
    %c0_8 = arith.constant 0 : index
    %c0_9 = arith.constant 0 : index
    %14 = vector.load %arg4[%c0_8, %c0_9] : memref<64x128xf32, #tpu.memory_space<vmem>>, vector<16x128xf32>
    tpu.vector_store %arg4[%c0_8, %c0_9], %13 {strides = array<i32>} : memref<64x128xf32, #tpu.memory_space<vmem>>, vector<16x128xf32>,
    return
  }
  func.func @transform_0(%arg0: i32, %arg1: i32) -> (i32, i32) {
    %c1_i32 = arith.constant 1 : i32
    %0 = arith.muli %arg0, %c1_i32 : i32
    %1 = arith.addi %0, %arg1 : i32
    %c0_i32 = arith.constant 0 : i32
    %c0_i32_0 = arith.constant 0 : i32
    return %1, %c0_i32 : i32, i32
  }
  func.func @transform_1(%arg0: i32, %arg1: i32) -> (i32, i32) {
    %c1_i32 = arith.constant 1 : i32
    %0 = arith.muli %arg0, %c1_i32 : i32
    %1 = arith.addi %0, %arg1 : i32
    %c0_i32 = arith.constant 0 : i32
    %c0_i32_0 = arith.constant 0 : i32
    return %1, %c0_i32 : i32, i32
  }
  func.func @transform_2(%arg0: i32, %arg1: i32) -> (i32, i32) {
    %c0_i32 = arith.constant 0 : i32
    %c0_i32_0 = arith.constant 0 : i32
    return %arg0, %c0_i32 : i32, i32
  }
}

</mosaic_0001>

<llo_original>
// kernel: tpu_custom_call.1
$region0: #{tpu_custom_call.1}
  #allocation0 [shape = 'u32[]', space=smem, size = 0x4, offset = 0x4, fixed_abs, tag = 'smem constant byte address 0x4 - core index']
  #allocation1 [shape = 'u32[144,128]{1,0:T(1,128)}', space=vmem, size = 0x12000, scoped, tag = 'internal scratch']
  %s0 = inlined_call_operand.hbm [shape: f32[16,128], index: 0, kind: input, shape index: {}]
  %s1 = inlined_call_operand.hbm [shape: f32[16,128], index: 1, kind: input, shape index: {}]
  %s2 = inlined_call_operand.hbm [shape: f32[64,128], index: 2, kind: output, shape index: {}]
  %s3 = sld [smem:[#allocation0]]
  $region30: #{tpu_custom_call.1} parent=0
    _
  %s5 = ssub.s32 1, %s3
  %s6 = scalar_select 0, %s5, %s3
  $region1: #{tpu_custom_call.1} parent=0
    #allocation2 [shape = 'u8[8192]{0}', space=vmem, size = 0x2000, scoped, tag = 'input window, operand 0, single buffered']
    #allocation3 [shape = 's32[1]{0}', space=sflag, size = 0x4, scoped, tag = 'scoped memory for tpu_custom_call.1']
    #allocation4 [shape = 's32[1]{0}', space=sflag, size = 0x4, scoped, tag = 'scoped memory for tpu_custom_call.1']
    #allocation5 [shape = 'u8[8192]{0}', space=vmem, size = 0x2000, scoped, tag = 'input window, operand 1, single buffered']
    #allocation6 [shape = 's32[1]{0}', space=sflag, size = 0x4, scoped, tag = 'scoped memory for tpu_custom_call.1']
    #allocation7 [shape = 'u8[32768]{0}', space=vmem, size = 0x8000, scoped, tag = 'output window, operand 0, single buffered']
    %7 = vsyncpa [#allocation3], 0
    %8 = vsyncpa [#allocation6], 0
    %9 = vsyncpa [#allocation4], 0
    // Predicated region
    $region2: #{tpu_custom_call.1} parent=1 // pred_check
      _
    $region3: #{tpu_custom_call.1} parent=1 // pred_check_branch
      %11 = sbr.rel (0) target = $region5
    $region4: #{tpu_custom_call.1} parent=1 // pred_region
      %s12 = sadd.s32 0, 0
      %s13 = smul.u32 2, %s12
      %s15 = ssub.s32 256, 256
      %16 = vsyncadd [#allocation3], %s15
      %s17 = smul.addr %s13, 128
      %s18 = scalar_lea.hbm %s0, %s17
      %s19 = sshll.u32 [#allocation2], 4
      %s20 = int_to_ptr.vmem [resolvable:$true] %s19
      %25 = dma.hbm_to_vmem [thread:$0]  %s18, 256, %s20, [#allocation3], 128, 128, 8
    $region5: #{tpu_custom_call.1} parent=1 // pred_fallthru
      _
    // Predicated region
    $region6: #{tpu_custom_call.1} parent=1 // pred_check
      _
    $region7: #{tpu_custom_call.1} parent=1 // pred_check_branch
      %27 = sbr.rel (0) target = $region9
    $region8: #{tpu_custom_call.1} parent=1 // pred_region
      %s28 = sadd.s32 0, 0
      %s29 = smul.u32 2, %s28
      %s31 = ssub.s32 256, 256
      %32 = vsyncadd [#allocation6], %s31
      %s33 = smul.addr %s29, 128
      %s34 = scalar_lea.hbm %s1, %s33
      %s35 = sshll.u32 [#allocation5], 4
      %s36 = int_to_ptr.vmem [resolvable:$true] %s35
      %41 = dma.hbm_to_vmem [thread:$0]  %s34, 256, %s36, [#allocation6], 128, 128, 8
    $region9: #{tpu_custom_call.1} parent=1 // pred_fallthru
      _
    // Predicated region
    $region10: #{tpu_custom_call.1} parent=1 // pred_check
      _
    $region11: #{tpu_custom_call.1} parent=1 // pred_check_branch
      %43 = sbr.rel (0) target = $region13
    $region12: #{tpu_custom_call.1} parent=1 // pred_region
      %44 = dma.done [#allocation3], 256
    $region13: #{tpu_custom_call.1} parent=1 // pred_fallthru
      _
    // Predicated region
    $region14: #{tpu_custom_call.1} parent=1 // pred_check
      _
    $region15: #{tpu_custom_call.1} parent=1 // pred_check_branch
      %46 = sbr.rel (0) target = $region17
    $region16: #{tpu_custom_call.1} parent=1 // pred_region
      %47 = dma.done [#allocation6], 256
    $region17: #{tpu_custom_call.1} parent=1 // pred_fallthru
      _
    %s48 = sadd.s32 0, 0
    %s49 = smul.u32 2, %s48
    %s50 = sadd.s32 0, 0
    %s51 = smul.u32 2, %s50
    %p52 = scmp.eq.s32.totalorder 0, 0
    // Predicated region
    $region18: #{tpu_custom_call.1} parent=1 // pred_check
      %p53 = pneg %p52
    $region19: #{tpu_custom_call.1} parent=1 // pred_check_branch
      %55 = sbr.rel (%p53) target = $region21
    $region20: #{tpu_custom_call.1} parent=1 // pred_region
      %56 = vst [vmem:[#allocation7] sm:$0xff] 0.0
      %57 = vst [vmem:[#allocation7 + $0x8] sm:$0xff] 0.0
      %58 = vst [vmem:[#allocation7 + $0x10] sm:$0xff] 0.0
      %59 = vst [vmem:[#allocation7 + $0x18] sm:$0xff] 0.0
      %60 = vst [vmem:[#allocation7 + $0x20] sm:$0xff] 0.0
      %61 = vst [vmem:[#allocation7 + $0x28] sm:$0xff] 0.0
      %62 = vst [vmem:[#allocation7 + $0x30] sm:$0xff] 0.0
      %63 = vst [vmem:[#allocation7 + $0x38] sm:$0xff] 0.0
    $region21: #{tpu_custom_call.1} parent=1 // pred_fallthru
      _
    %v64 = vld [vmem:[#allocation2] sm:$0xff]
    %v65 = vld [vmem:[#allocation2 + $0x8] sm:$0xff]
    %v66 = vld [vmem:[#allocation5] sm:$0xff]
    %v67 = vld [vmem:[#allocation5 + $0x8] sm:$0xff]
    %v68 = vsub.f32 %v66, %v64
    %v69 = vsub.f32 %v67, %v65
    %vm70 = vcmp.lt.f32.partialorder %v68, 0.0
    %vm71 = vcmp.lt.f32.partialorder %v69, 0.0
    %v72 = vsel %vm70, -0.3, 0.7
    %v73 = vsel %vm71, -0.3, 0.7
    %v74 = vmul.f32 %v72, %v68
    %v75 = vmul.f32 %v73, %v69
    %v76 = vld [vmem:[#allocation7] sm:$0xff]
    %v77 = vld [vmem:[#allocation7 + $0x8] sm:$0xff]
    %v78 = vadd.f32 %v76, %v74
    %v79 = vadd.f32 %v77, %v75
    %80 = vst [vmem:[#allocation7] sm:$0xff] %v78
    %81 = vst [vmem:[#allocation7 + $0x8] sm:$0xff] %v79
    // Predicated region
    $region22: #{tpu_custom_call.1} parent=1 // pred_check
      _
    $region23: #{tpu_custom_call.1} parent=1 // pred_check_branch
      %83 = sbr.rel (0) target = $region25
    $region24: #{tpu_custom_call.1} parent=1 // pred_region
      %s85 = ssub.s32 1024, 1024
      %86 = vsyncadd [#allocation4], %s85
      %s87 = sshll.u32 [#allocation7], 4
      %s88 = int_to_ptr.vmem [resolvable:$true] %s87
      %93 = dma.vmem_to_hbm [thread:$0]  %s88, 1024, %s2, [#allocation4], 128, 128, 8
    $region25: #{tpu_custom_call.1} parent=1 // pred_fallthru
      _
    // Predicated region
    $region26: #{tpu_custom_call.1} parent=1 // pred_check
      _
    $region27: #{tpu_custom_call.1} parent=1 // pred_check_branch
      %95 = sbr.rel (0) target = $region29
    $region28: #{tpu_custom_call.1} parent=1 // pred_region
      %96 = dma.done [#allocation4], 1024
    $region29: #{tpu_custom_call.1} parent=1 // pred_fallthru
      _
    %97 = vsyncpa [#allocation3], 1
    %98 = vsyncpa [#allocation6], 1
    %99 = vsyncpa [#allocation4], 1

</llo_original>
